<compile_context>
chip_gen: v5e
topology: v5e:2x2
jax: 0.10.0
libtpu: 0.0.40
codegen_flags: <defaults>
</compile_context>

<pallas_src>
import functools

import jax
import jax.numpy as jnp
from jax.experimental import pallas as pl
from jax.experimental.pallas import tpu as pltpu

BN_EPS = 1e-5
HIDDEN = 64
HP = 128           # lane-padded hidden width (one full vreg lane dimension)
MIB = 1024 * 1024


def _round_up(x, m):
    return (x + m - 1) // m * m


def net_kernel(x_ref, w1_ref, w2_ref, vec_ref, b3_ref, o_ref,
               act_ref, stat_ref, *, b_true, tb, nt, compute_dtype):
    i = pl.program_id(0)

    @pl.when(i == 0)
    def _init():
        stat_ref[...] = jnp.zeros_like(stat_ref)

    # ---- every grid step: fc1 on this batch tile + (masked) BN1 statistics ----------
    x = x_ref[...].astype(compute_dtype)                  # f32 HBM stream, cast on the VPU
    mm = jnp.dot(x, w1_ref[...], preferred_element_type=jnp.float32)   # (tb, HP), pre-bias

    tile_full = (i + 1) * tb <= b_true                    # no padded/ragged rows in this tile?

    @pl.when(tile_full)
    def _stats_unmasked():
        stat_ref[0:1, :] = stat_ref[0:1, :] + jnp.sum(mm, axis=0, keepdims=True)
        stat_ref[1:2, :] = stat_ref[1:2, :] + jnp.sum(mm * mm, axis=0, keepdims=True)

    @pl.when(jnp.logical_not(tile_full))
    def _stats_masked():
        row = jax.lax.broadcasted_iota(jnp.int32, (tb, 1), 0) + i * tb
        mmv = jnp.where(row < b_true, mm, 0.0)            # where-mask: OOB garbage can't poison
        stat_ref[0:1, :] = stat_ref[0:1, :] + jnp.sum(mmv, axis=0, keepdims=True)
        stat_ref[1:2, :] = stat_ref[1:2, :] + jnp.sum(mmv * mmv, axis=0, keepdims=True)

    start = pl.multiple_of(i * tb, tb)
    act_ref[pl.ds(start, tb), :] = mm.astype(act_ref.dtype)   # bf16 stash of pre-BN1 activations

    # ---- last step: chunked BN1+ReLU -> fc2 -> BN2+ReLU -> fc3 over the resident stash ----
    @pl.when(i == nt - 1)
    def _finalize():
        inv_n = 1.0 / b_true
        # Linear bias + training-mode BN cancels exactly, so stats on the pre-bias matmul
        # are both sufficient and better conditioned for the one-pass E[x^2]-E[x]^2 variance.
        mean1 = stat_ref[0:1, :] * inv_n
        var1 = jnp.maximum(stat_ref[1:2, :] * inv_n - mean1 * mean1, 0.0)
        scale1 = jax.lax.rsqrt(var1 + BN_EPS) * vec_ref[1:2, :]       # * gamma1
        shift1 = vec_ref[2:3, :] - mean1 * scale1                     # beta1 - mean1*scale1

        w2 = w2_ref[...]
        stat_ref[...] = jnp.zeros_like(stat_ref)                      # reuse for BN2 stats

        # Pass A: per tb-row chunk, BN1+ReLU, fc2, BN2 partial stats; stash h2 (pre-bias)
        # back into the same bf16 buffer.  Live temporaries stay O(tb*128).
        @pl.loop(0, nt)
        def _pass_a(c):
            start_c = pl.multiple_of(c * tb, tb)
            h1n = jnp.maximum(
                act_ref[pl.ds(start_c, tb), :].astype(jnp.float32) * scale1 + shift1, 0.0)
            h2 = jnp.dot(h1n.astype(compute_dtype), w2,
                         preferred_element_type=jnp.float32)           # (tb, HP)
            row = jax.lax.broadcasted_iota(jnp.int32, (tb, 1), 0) + start_c
            h2v = jnp.where(row < b_true, h2, 0.0)
            stat_ref[0:1, :] = stat_ref[0:1, :] + jnp.sum(h2v, axis=0, keepdims=True)
            stat_ref[1:2, :] = stat_ref[1:2, :] + jnp.sum(h2v * h2v, axis=0, keepdims=True)
            act_ref[pl.ds(start_c, tb), :] = h2.astype(act_ref.dtype)

        mean2 = stat_ref[0:1, :] * inv_n
        var2 = jnp.maximum(stat_ref[1:2, :] * inv_n - mean2 * mean2, 0.0)
        scale2 = jax.lax.rsqrt(var2 + BN_EPS) * vec_ref[4:5, :]       # * gamma2
        shift2 = vec_ref[5:6, :] - mean2 * scale2                     # beta2 - mean2*scale2
        w3 = vec_ref[6:7, :]
        b3 = b3_ref[0]

        # Pass B: BN2+ReLU and fc3 as a lane reduction; one lane-dense (1, tb) output row
        # per chunk (no [B, 1] masked single-lane stores).
        @pl.loop(0, nt)
        def _pass_b(c):
            start_c = pl.multiple_of(c * tb, tb)
            h2n = jnp.maximum(
                act_ref[pl.ds(start_c, tb), :].astype(jnp.float32) * scale2 + shift2, 0.0)
            outc = jnp.sum(h2n * w3, axis=-1) + b3                    # (tb,)
            o_ref[pl.ds(c, 1), :] = outc[None, :].astype(o_ref.dtype)


def net_forward(x, packed, *, tb=2048, compute_dtype=jnp.bfloat16):
    b, d_in = x.shape
    tb = min(_round_up(tb, 16), _round_up(b, 16))         # multiple of 16 (bf16 sublane packing)
    b_pad = _round_up(b, tb)
    nt = b_pad // tb
    itemsize = jnp.dtype(compute_dtype).itemsize

    # Generation-aware VMEM budget (v7x: 64 MiB physical; v5e/v6e: 128 MiB).
    try:
        vmem_cap = int(pltpu.get_tpu_info().vmem_capacity_bytes)
    except Exception:
        vmem_cap = 64 * MIB                                # assume the tightest chip (v7x)
    vmem_limit = min(vmem_cap - 16 * MIB, 112 * MIB)

    stash_bytes = b_pad * HP * itemsize                    # bf16 activation stash (only B-scaling buf)
    chunk_bytes = 5 * tb * HP * 4                          # live f32 temporaries per finalize chunk
    fixed_bytes = (2 * tb * d_in * 4                       # double-buffered x tiles (f32)
                   + 2 * (d_in * HP + HP * HP) * itemsize  # w1/w2 (pipeline double-buffered)
                   + 2 * 8 * HP * 4 + 2 * HP * 4           # packed vectors + BN stat scratch
                   + nt * tb * 4)                          # resident output block
    assert stash_bytes + chunk_bytes + fixed_bytes + 2 * MIB <= vmem_limit, (
        "batch too large for the VMEM-resident BatchNorm stash on this TPU generation; "
        "reduce B (or tb) or switch to a two-pass HBM-streamed BatchNorm scheme")

    kernel = functools.partial(net_kernel, b_true=b, tb=tb, nt=nt,
                               compute_dtype=compute_dtype)

    cost = pl.CostEstimate(
        flops=2 * b_pad * (d_in * HP + HP * HP + HP) + 12 * b_pad * HP,
        transcendentals=2 * HP,
        bytes_accessed=(b * d_in * 4 + nt * tb * 4
                        + (d_in * HP + HP * HP) * itemsize + 8 * HP * 4 + 4),
    )

    out = pl.pallas_call(
        kernel,
        out_shape=jax.ShapeDtypeStruct((nt, tb), jnp.float32),
        grid=(nt,),
        in_specs=[
            pl.BlockSpec((tb, d_in), lambda i: (i, 0)),          # x: streamed f32 tiles
            pl.BlockSpec((d_in, HP), lambda i: (0, 0)),          # w1: VMEM-resident
            pl.BlockSpec((HP, HP), lambda i: (0, 0)),            # w2: VMEM-resident
            pl.BlockSpec((8, HP), lambda i: (0, 0)),             # packed gamma/beta/w3 vectors
            pl.BlockSpec(memory_space=pltpu.MemorySpace.SMEM),   # b3 scalar
        ],
        out_specs=pl.BlockSpec((nt, tb), lambda i: (0, 0)),      # lane-dense resident output
        scratch_shapes=[
            pltpu.VMEM((b_pad, HP), compute_dtype),   # bf16 activation stash (fc1 mm, then h2)
            pltpu.VMEM((2, HP), jnp.float32),         # [sum, sumsq] BN accumulators
        ],
        compiler_params=pltpu.CompilerParams(
            # Training-mode BN couples the batch tiles -> sequential reduction axis.
            dimension_semantics=("arbitrary",),
            vmem_limit_bytes=vmem_limit,
        ),
        cost_estimate=cost,
    )(x, packed["w1"], packed["w2"], packed["vecs"], packed["b3"])

    return out.reshape(-1)[:b].reshape(b, 1)


def init_params(key, d_in, hidden=HIDDEN):
    """Raw parameters mirroring the PyTorch module (weights stored as [fan_in, fan_out])."""
    ks = jax.random.split(key, 6)

    def linear(kw, kb, fan_in, fan_out):
        bound = 1.0 / (fan_in ** 0.5)  # nn.Linear default: U(-1/sqrt(fan_in), 1/sqrt(fan_in))
        w = jax.random.uniform(kw, (fan_in, fan_out), jnp.float32, -bound, bound)
        bvec = jax.random.uniform(kb, (fan_out,), jnp.float32, -bound, bound)
        return w, bvec

    w1, b1 = linear(ks[0], ks[1], d_in, hidden)
    w2, b2 = linear(ks[2], ks[3], hidden, hidden)
    w3, b3 = linear(ks[4], ks[5], hidden, 1)
    return {
        "w1": w1, "b1": b1,
        "g1": jnp.ones((hidden,), jnp.float32), "be1": jnp.zeros((hidden,), jnp.float32),
        "w2": w2, "b2": b2,
        "g2": jnp.ones((hidden,), jnp.float32), "be2": jnp.zeros((hidden,), jnp.float32),
        "w3": w3, "b3": b3,
    }


def pack_params(raw, compute_dtype=jnp.bfloat16):
    """Pad hidden 64->128 and pack per-feature vectors. Done once, outside the hot path."""
    d_in, hidden = raw["w1"].shape
    w1p = jnp.zeros((d_in, HP), jnp.float32).at[:, :hidden].set(raw["w1"])
    w2p = jnp.zeros((HP, HP), jnp.float32).at[:hidden, :hidden].set(raw["w2"])

    def row(v):
        return jnp.zeros((HP,), jnp.float32).at[: v.shape[0]].set(v)

    # Padded lanes get bias = gamma = beta = 0 (NOT gamma = 1) so they stay exactly 0
    # through BN + ReLU and contribute nothing to fc2 / fc3.  (b1/b2 are packed for layout
    # parity but unused in the kernel: Linear bias cancels under training-mode BatchNorm.)
    vecs = jnp.stack([
        row(raw["b1"]), row(raw["g1"]), row(raw["be1"]),
        row(raw["b2"]), row(raw["g2"]), row(raw["be2"]),
        row(raw["w3"][:, 0]), jnp.zeros((HP,), jnp.float32),
    ], axis=0)                                    # (8, 128): a single vreg-sized DMA

    return {
        "w1": w1p.astype(compute_dtype),
        "w2": w2p.astype(compute_dtype),
        "vecs": vecs,                             # f32: BN math stays f32
        "b3": raw["b3"].reshape((1,)).astype(jnp.float32),
    }


def net_forward_ref(x, raw, compute_dtype=jnp.bfloat16):
    """Pure-JAX reference mirroring the module math (bf16 matmul operands, f32 accum,
    training-mode BatchNorm with biased variance)."""
    def bn_relu(h, g, b):
        m = jnp.mean(h, axis=0, keepdims=True)
        v = jnp.maximum(jnp.mean(h * h, axis=0, keepdims=True) - m * m, 0.0)
        return jnp.maximum((h - m) * jax.lax.rsqrt(v + BN_EPS) * g + b, 0.0)

    h1 = jnp.dot(x.astype(compute_dtype), raw["w1"].astype(compute_dtype),
                 preferred_element_type=jnp.float32) + raw["b1"]
    h1 = bn_relu(h1, raw["g1"], raw["be1"])
    h2 = jnp.dot(h1.astype(compute_dtype), raw["w2"].astype(compute_dtype),
                 preferred_element_type=jnp.float32) + raw["b2"]
    h2 = bn_relu(h2, raw["g2"], raw["be2"])
    return jnp.dot(h2, raw["w3"]) + raw["b3"]


if __name__ == "__main__":
    key = jax.random.PRNGKey(0)
    k_x, k_p = jax.random.split(key)

    # Small, standardized-like inputs.  B is deliberately NOT a multiple of the batch tile
    # so the ragged-tile where-masking of the BatchNorm statistics is exercised.
    B, D_IN = 100, 16
    x = jax.random.normal(k_x, (B, D_IN), dtype=jnp.float32)

    raw = init_params(k_p, D_IN)
    packed = pack_params(raw)

    out = net_forward(x, packed, tb=32)   # 4 batch tiles of 32 rows (last tile ragged: 4 valid)
    jax.block_until_ready(out)

    ref = net_forward_ref(x, raw)
    assert out.shape == (B, 1)
    assert jnp.allclose(out, ref, atol=1.5e-2, rtol=1.5e-2), (
        f"mismatch vs pure-JAX reference; max abs diff = {jnp.max(jnp.abs(out - ref))}")

    print("KERNEL_OK")
</pallas_src>

<mosaic_0001>
module attributes {stable_mosaic.version = 11 : i64} {
  func.func @net_kernel(%arg0: i32, %arg1: memref<32x16xf32, #tpu.memory_space<vmem>>, %arg2: memref<16x128xbf16, #tpu.memory_space<vmem>>, %arg3: memref<128x128xbf16, #tpu.memory_space<vmem>>, %arg4: memref<8x128xf32, #tpu.memory_space<vmem>>, %arg5: memref<1xf32, #tpu.memory_space<smem>>, %arg6: memref<4x32xf32, #tpu.memory_space<vmem>>, %arg7: memref<128x128xbf16, #tpu.memory_space<vmem>>, %arg8: memref<2x128xf32, #tpu.memory_space<vmem>>) attributes {dimension_semantics = [#tpu.dimension_semantics<arbitrary>], iteration_bounds = array<i64: 4>, scalar_prefetch = 0 : i64, scratch_operands = 2 : i64, tpu.core_type = #tpu.core_type<tc>, window_params = [{transform_indices = @transform_0, window_bounds = array<i64: 32, 16>}, {pipeline_mode = #tpu.pipeline_mode<synchronous>, transform_indices = @transform_1, window_bounds = array<i64: 16, 128>}, {pipeline_mode = #tpu.pipeline_mode<synchronous>, transform_indices = @transform_2, window_bounds = array<i64: 128, 128>}, {pipeline_mode = #tpu.pipeline_mode<synchronous>, transform_indices = @transform_3, window_bounds = array<i64: 8, 128>}, {transform_indices = @transform_4, window_bounds = array<i64: 1>}, {pipeline_mode = #tpu.pipeline_mode<synchronous>, transform_indices = @transform_5, window_bounds = array<i64: 4, 32>}]} {
    %c0_i32 = arith.constant 0 : i32
    %0 = arith.cmpi eq, %arg0, %c0_i32 : i32
    %1 = arith.extui %0 : i1 to i32
    %c0_i32_0 = arith.constant 0 : i32
    %2 = arith.cmpi ne, %1, %c0_i32_0 : i32
    scf.if %2 {
      %cst_9 = arith.constant 0.000000e+00 : f32
      %23 = vector.broadcast %cst_9 : f32 to vector<2x128xf32>
      %c0_10 = arith.constant 0 : index
      %c0_11 = arith.constant 0 : index
      %24 = vector.load %arg8[%c0_10, %c0_11] : memref<2x128xf32, #tpu.memory_space<vmem>>, vector<2x128xf32>
      tpu.vector_store %arg8[%c0_10, %c0_11], %23 {strides = array<i32>} : memref<2x128xf32, #tpu.memory_space<vmem>>, vector<2x128xf32>,
    } else {
    }
    %c0 = arith.constant 0 : index
    %c0_1 = arith.constant 0 : index
    %3 = vector.load %arg1[%c0, %c0_1] : memref<32x16xf32, #tpu.memory_space<vmem>>, vector<32x16xf32>
    %4 = arith.truncf %3 : vector<32x16xf32> to vector<32x16xbf16>
    %c0_2 = arith.constant 0 : index
    %c0_3 = arith.constant 0 : index
    %5 = vector.load %arg2[%c0_2, %c0_3] : memref<16x128xbf16, #tpu.memory_space<vmem>>, vector<16x128xbf16>
    %cst = arith.constant dense<0.000000e+00> : vector<32x128xf32>
    %6 = tpu.matmul %4, %5, %cst {dimension_numbers = #tpu.dot_dimension_numbers<[1], [0], [0], [1], [0, 0, 1, 1], [], []>} : vector<32x16xbf16>, vector<16x128xbf16>, vector<32x128xf32> -> vector<32x128xf32>
    %c1_i32 = arith.constant 1 : i32
    %7 = arith.addi %arg0, %c1_i32 : i32
    %c32_i32 = arith.constant 32 : i32
    %8 = arith.muli %7, %c32_i32 : i32
    %c100_i32 = arith.constant 100 : i32
    %9 = arith.cmpi sle, %8, %c100_i32 : i32
    %10 = arith.extui %9 : i1 to i32
    %c0_i32_4 = arith.constant 0 : i32
    %11 = arith.cmpi ne, %10, %c0_i32_4 : i32
    scf.if %11 {
      %c0_9 = arith.constant 0 : index
      %c0_10 = arith.constant 0 : index
      %23 = vector.load %arg8[%c0_9, %c0_10] : memref<2x128xf32, #tpu.memory_space<vmem>>, vector<1x128xf32>
      %cst_11 = arith.constant dense<0.000000e+00> : vector<128xf32>
      %24 = vector.multi_reduction <add>, %6, %cst_11 [0] : vector<32x128xf32> to vector<128xf32>
      %25 = vector.shape_cast %24 : vector<128xf32> to vector<1x128xf32>
      %26 = arith.addf %23, %25 : vector<1x128xf32>
      %c0_12 = arith.constant 0 : index
      %c0_13 = arith.constant 0 : index
      %27 = vector.load %arg8[%c0_12, %c0_13] : memref<2x128xf32, #tpu.memory_space<vmem>>, vector<1x128xf32>
      tpu.vector_store %arg8[%c0_12, %c0_13], %26 {strides = array<i32>} : memref<2x128xf32, #tpu.memory_space<vmem>>, vector<1x128xf32>,
      %c1 = arith.constant 1 : index
      %c0_14 = arith.constant 0 : index
      %28 = vector.load %arg8[%c1, %c0_14] : memref<2x128xf32, #tpu.memory_space<vmem>>, vector<1x128xf32>
      %29 = arith.mulf %6, %6 : vector<32x128xf32>
      %cst_15 = arith.constant dense<0.000000e+00> : vector<128xf32>
      %30 = vector.multi_reduction <add>, %29, %cst_15 [0] : vector<32x128xf32> to vector<128xf32>
      %31 = vector.shape_cast %30 : vector<128xf32> to vector<1x128xf32>
      %32 = arith.addf %28, %31 : vector<1x128xf32>
      %c1_16 = arith.constant 1 : index
      %c0_17 = arith.constant 0 : index
      %33 = vector.load %arg8[%c1_16, %c0_17] : memref<2x128xf32, #tpu.memory_space<vmem>>, vector<1x128xf32>
      tpu.vector_store %arg8[%c1_16, %c0_17], %32 {strides = array<i32>} : memref<2x128xf32, #tpu.memory_space<vmem>>, vector<1x128xf32>,
    } else {
    }
    %true = arith.constant true
    %12 = arith.xori %9, %true : i1
    %13 = arith.extui %12 : i1 to i32
    %c0_i32_5 = arith.constant 0 : i32
    %14 = arith.cmpi ne, %13, %c0_i32_5 : i32
    scf.if %14 {
      %23 = tpu.iota {dimensions = array<i32: 0>} : vector<32x1xi32>
      %c32_i32_9 = arith.constant 32 : i32
      %24 = arith.muli %arg0, %c32_i32_9 : i32
      %25 = vector.broadcast %24 : i32 to vector<32x1xi32>
      %26 = arith.addi %23, %25 : vector<32x1xi32>
      %c100_i32_10 = arith.constant 100 : i32
      %27 = vector.broadcast %c100_i32_10 : i32 to vector<32x1xi32>
      %28 = arith.cmpi slt, %26, %27 : vector<32x1xi32>
      %cst_11 = arith.constant 0.000000e+00 : f32
      %29 = vector.shape_cast %28 : vector<32x1xi1> to vector<32x1xi1>
      %30 = vector.broadcast %29 : vector<32x1xi1> to vector<32x128xi1>
      %31 = vector.broadcast %cst_11 : f32 to vector<32x128xf32>
      %32 = arith.select %30, %6, %31 : vector<32x128xi1>, vector<32x128xf32>
      %c0_12 = arith.constant 0 : index
      %c0_13 = arith.constant 0 : index
      %33 = vector.load %arg8[%c0_12, %c0_13] : memref<2x128xf32, #tpu.memory_space<vmem>>, vector<1x128xf32>
      %cst_14 = arith.constant dense<0.000000e+00> : vector<128xf32>
      %34 = vector.multi_reduction <add>, %32, %cst_14 [0] : vector<32x128xf32> to vector<128xf32>
      %35 = vector.shape_cast %34 : vector<128xf32> to vector<1x128xf32>
      %36 = arith.addf %33, %35 : vector<1x128xf32>
      %c0_15 = arith.constant 0 : index
      %c0_16 = arith.constant 0 : index
      %37 = vector.load %arg8[%c0_15, %c0_16] : memref<2x128xf32, #tpu.memory_space<vmem>>, vector<1x128xf32>
      tpu.vector_store %arg8[%c0_15, %c0_16], %36 {strides = array<i32>} : memref<2x128xf32, #tpu.memory_space<vmem>>, vector<1x128xf32>,
      %c1 = arith.constant 1 : index
      %c0_17 = arith.constant 0 : index
      %38 = vector.load %arg8[%c1, %c0_17] : memref<2x128xf32, #tpu.memory_space<vmem>>, vector<1x128xf32>
      %39 = arith.mulf %32, %32 : vector<32x128xf32>
      %cst_18 = arith.constant dense<0.000000e+00> : vector<128xf32>
      %40 = vector.multi_reduction <add>, %39, %cst_18 [0] : vector<32x128xf32> to vector<128xf32>
      %41 = vector.shape_cast %40 : vector<128xf32> to vector<1x128xf32>
      %42 = arith.addf %38, %41 : vector<1x128xf32>
      %c1_19 = arith.constant 1 : index
      %c0_20 = arith.constant 0 : index
      %43 = vector.load %arg8[%c1_19, %c0_20] : memref<2x128xf32, #tpu.memory_space<vmem>>, vector<1x128xf32>
      tpu.vector_store %arg8[%c1_19, %c0_20], %42 {strides = array<i32>} : memref<2x128xf32, #tpu.memory_space<vmem>>, vector<1x128xf32>,
    } else {
    }
    %c32_i32_6 = arith.constant 32 : i32
    %15 = arith.muli %arg0, %c32_i32_6 : i32
    %16 = tpu.assume_multiple %15, 32 : i32
    %17 = arith.truncf %6 : vector<32x128xf32> to vector<32x128xbf16>
    %18 = arith.index_cast %16 : i32 to index
    %c0_7 = arith.constant 0 : index
    %19 = vector.load %arg7[%18, %c0_7] : memref<128x128xbf16, #tpu.memory_space<vmem>>, vector<32x128xbf16>
    tpu.vector_store %arg7[%18, %c0_7], %17 {strides = array<i32>} : memref<128x128xbf16, #tpu.memory_space<vmem>>, vector<32x128xbf16>,
    %c3_i32 = arith.constant 3 : i32
    %20 = arith.cmpi eq, %arg0, %c3_i32 : i32
    %21 = arith.extui %20 : i1 to i32
    %c0_i32_8 = arith.constant 0 : i32
    %22 = arith.cmpi ne, %21, %c0_i32_8 : i32
    scf.if %22 {
      %c0_9 = arith.constant 0 : index
      %c0_10 = arith.constant 0 : index
      %23 = vector.load %arg8[%c0_9, %c0_10] : memref<2x128xf32, #tpu.memory_space<vmem>>, vector<1x128xf32>
      %cst_11 = arith.constant 0.00999999977 : f32
      %24 = vector.broadcast %cst_11 : f32 to vector<1x128xf32>
      %25 = arith.mulf %23, %24 : vector<1x128xf32>
      %c1 = arith.constant 1 : index
      %c0_12 = arith.constant 0 : index
      %26 = vector.load %arg8[%c1, %c0_12] : memref<2x128xf32, #tpu.memory_space<vmem>>, vector<1x128xf32>
      %cst_13 = arith.constant 0.00999999977 : f32
      %27 = vector.broadcast %cst_13 : f32 to vector<1x128xf32>
      %28 = arith.mulf %26, %27 : vector<1x128xf32>
      %29 = arith.mulf %25, %25 : vector<1x128xf32>
      %30 = arith.subf %28, %29 : vector<1x128xf32>
      %cst_14 = arith.constant 0.000000e+00 : f32
      %31 = vector.broadcast %cst_14 : f32 to vector<1x128xf32>
      %32 = arith.maximumf %30, %31 : vector<1x128xf32>
      %cst_15 = arith.constant 9.99999974E-6 : f32
      %33 = vector.broadcast %cst_15 : f32 to vector<1x128xf32>
      %34 = arith.addf %32, %33 : vector<1x128xf32>
      %35 = math.rsqrt %34 : vector<1x128xf32>
      %c1_16 = arith.constant 1 : index
      %c0_17 = arith.constant 0 : index
      %36 = vector.load %arg4[%c1_16, %c0_17] : memref<8x128xf32, #tpu.memory_space<vmem>>, vector<1x128xf32>
      %37 = arith.mulf %35, %36 : vector<1x128xf32>
      %c2 = arith.constant 2 : index
      %c0_18 = arith.constant 0 : index
      %38 = vector.load %arg4[%c2, %c0_18] : memref<8x128xf32, #tpu.memory_space<vmem>>, vector<1x128xf32>
      %39 = arith.mulf %25, %37 : vector<1x128xf32>
      %40 = arith.subf %38, %39 : vector<1x128xf32>
      %c0_19 = arith.constant 0 : index
      %c0_20 = arith.constant 0 : index
      %41 = vector.load %arg3[%c0_19, %c0_20] : memref<128x128xbf16, #tpu.memory_space<vmem>>, vector<128x128xbf16>
      %cst_21 = arith.constant 0.000000e+00 : f32
      %42 = vector.broadcast %cst_21 : f32 to vector<2x128xf32>
      %c0_22 = arith.constant 0 : index
      %c0_23 = arith.constant 0 : index
      %43 = vector.load %arg8[%c0_22, %c0_23] : memref<2x128xf32, #tpu.memory_space<vmem>>, vector<2x128xf32>
      tpu.vector_store %arg8[%c0_22, %c0_23], %42 {strides = array<i32>} : memref<2x128xf32, #tpu.memory_space<vmem>>, vector<2x128xf32>,
      %c0_i32_24 = arith.constant 0 : i32
      %c4_i32 = arith.constant 4 : i32
      %44 = arith.addi %c0_i32_24, %c4_i32 : i32
      %c1_i32_25 = arith.constant 1 : i32
      scf.for %arg9 = %c0_i32_24 to %44 step %c1_i32_25  : i32 {
        %c1_i32_43 = arith.constant 1 : i32
        %66 = arith.muli %arg9, %c1_i32_43 : i32
        %c0_i32_44 = arith.constant 0 : i32
        %67 = arith.addi %c0_i32_44, %66 : i32
        %c32_i32_45 = arith.constant 32 : i32
        %68 = arith.muli %67, %c32_i32_45 : i32
        %69 = tpu.assume_multiple %68, 32 : i32
        %70 = arith.index_cast %69 : i32 to index
        %c0_46 = arith.constant 0 : index
        %71 = vector.load %arg7[%70, %c0_46] : memref<128x128xbf16, #tpu.memory_space<vmem>>, vector<32x128xbf16>
        %72 = arith.extf %71 : vector<32x128xbf16> to vector<32x128xf32>
        %73 = vector.broadcast %37 : vector<1x128xf32> to vector<32x128xf32>
        %74 = arith.mulf %72, %73 : vector<32x128xf32>
        %75 = vector.broadcast %40 : vector<1x128xf32> to vector<32x128xf32>
        %76 = arith.addf %74, %75 : vector<32x128xf32>
        %cst_47 = arith.constant 0.000000e+00 : f32
        %77 = vector.broadcast %cst_47 : f32 to vector<32x128xf32>
        %78 = arith.maximumf %76, %77 : vector<32x128xf32>
        %79 = arith.truncf %78 : vector<32x128xf32> to vector<32x128xbf16>
        %cst_48 = arith.constant dense<0.000000e+00> : vector<32x128xf32>
        %80 = tpu.matmul %79, %41, %cst_48 {dimension_numbers = #tpu.dot_dimension_numbers<[1], [0], [0], [1], [0, 0, 1, 1], [], []>} : vector<32x128xbf16>, vector<128x128xbf16>, vector<32x128xf32> -> vector<32x128xf32>
        %81 = tpu.iota {dimensions = array<i32: 0>} : vector<32x1xi32>
        %82 = vector.broadcast %69 : i32 to vector<32x1xi32>
        %83 = arith.addi %81, %82 : vector<32x1xi32>
        %c100_i32_49 = arith.constant 100 : i32
        %84 = vector.broadcast %c100_i32_49 : i32 to vector<32x1xi32>
        %85 = arith.cmpi slt, %83, %84 : vector<32x1xi32>
        %cst_50 = arith.constant 0.000000e+00 : f32
        %86 = vector.shape_cast %85 : vector<32x1xi1> to vector<32x1xi1>
        %87 = vector.broadcast %86 : vector<32x1xi1> to vector<32x128xi1>
        %88 = vector.broadcast %cst_50 : f32 to vector<32x128xf32>
        %89 = arith.select %87, %80, %88 : vector<32x128xi1>, vector<32x128xf32>
        %c0_51 = arith.constant 0 : index
        %c0_52 = arith.constant 0 : index
        %90 = vector.load %arg8[%c0_51, %c0_52] : memref<2x128xf32, #tpu.memory_space<vmem>>, vector<1x128xf32>
        %cst_53 = arith.constant dense<0.000000e+00> : vector<128xf32>
        %91 = vector.multi_reduction <add>, %89, %cst_53 [0] : vector<32x128xf32> to vector<128xf32>
        %92 = vector.shape_cast %91 : vector<128xf32> to vector<1x128xf32>
        %93 = arith.addf %90, %92 : vector<1x128xf32>
        %c0_54 = arith.constant 0 : index
        %c0_55 = arith.constant 0 : index
        %94 = vector.load %arg8[%c0_54, %c0_55] : memref<2x128xf32, #tpu.memory_space<vmem>>, vector<1x128xf32>
        tpu.vector_store %arg8[%c0_54, %c0_55], %93 {strides = array<i32>} : memref<2x128xf32, #tpu.memory_space<vmem>>, vector<1x128xf32>,
        %c1_56 = arith.constant 1 : index
        %c0_57 = arith.constant 0 : index
        %95 = vector.load %arg8[%c1_56, %c0_57] : memref<2x128xf32, #tpu.memory_space<vmem>>, vector<1x128xf32>
        %96 = arith.mulf %89, %89 : vector<32x128xf32>
        %cst_58 = arith.constant dense<0.000000e+00> : vector<128xf32>
        %97 = vector.multi_reduction <add>, %96, %cst_58 [0] : vector<32x128xf32> to vector<128xf32>
        %98 = vector.shape_cast %97 : vector<128xf32> to vector<1x128xf32>
        %99 = arith.addf %95, %98 : vector<1x128xf32>
        %c1_59 = arith.constant 1 : index
        %c0_60 = arith.constant 0 : index
        %100 = vector.load %arg8[%c1_59, %c0_60] : memref<2x128xf32, #tpu.memory_space<vmem>>, vector<1x128xf32>
        tpu.vector_store %arg8[%c1_59, %c0_60], %99 {strides = array<i32>} : memref<2x128xf32, #tpu.memory_space<vmem>>, vector<1x128xf32>,
        %101 = arith.truncf %80 : vector<32x128xf32> to vector<32x128xbf16>
        %102 = arith.index_cast %69 : i32 to index
        %c0_61 = arith.constant 0 : index
        %103 = vector.load %arg7[%102, %c0_61] : memref<128x128xbf16, #tpu.memory_space<vmem>>, vector<32x128xbf16>
        tpu.vector_store %arg7[%102, %c0_61], %101 {strides = array<i32>} : memref<128x128xbf16, #tpu.memory_space<vmem>>, vector<32x128xbf16>,
      }
      %c4_i32_26 = arith.constant 4 : i32
      %c0_27 = arith.constant 0 : index
      %c0_28 = arith.constant 0 : index
      %45 = vector.load %arg8[%c0_27, %c0_28] : memref<2x128xf32, #tpu.memory_space<vmem>>, vector<1x128xf32>
      %cst_29 = arith.constant 0.00999999977 : f32
      %46 = vector.broadcast %cst_29 : f32 to vector<1x128xf32>
      %47 = arith.mulf %45, %46 : vector<1x128xf32>
      %c1_30 = arith.constant 1 : index
      %c0_31 = arith.constant 0 : index
      %48 = vector.load %arg8[%c1_30, %c0_31] : memref<2x128xf32, #tpu.memory_space<vmem>>, vector<1x128xf32>
      %cst_32 = arith.constant 0.00999999977 : f32
      %49 = vector.broadcast %cst_32 : f32 to vector<1x128xf32>
      %50 = arith.mulf %48, %49 : vector<1x128xf32>
      %51 = arith.mulf %47, %47 : vector<1x128xf32>
      %52 = arith.subf %50, %51 : vector<1x128xf32>
      %cst_33 = arith.constant 0.000000e+00 : f32
      %53 = vector.broadcast %cst_33 : f32 to vector<1x128xf32>
      %54 = arith.maximumf %52, %53 : vector<1x128xf32>
      %cst_34 = arith.constant 9.99999974E-6 : f32
      %55 = vector.broadcast %cst_34 : f32 to vector<1x128xf32>
      %56 = arith.addf %54, %55 : vector<1x128xf32>
      %57 = math.rsqrt %56 : vector<1x128xf32>
      %c4 = arith.constant 4 : index
      %c0_35 = arith.constant 0 : index
      %58 = vector.load %arg4[%c4, %c0_35] : memref<8x128xf32, #tpu.memory_space<vmem>>, vector<1x128xf32>
      %59 = arith.mulf %57, %58 : vector<1x128xf32>
      %c5 = arith.constant 5 : index
      %c0_36 = arith.constant 0 : index
      %60 = vector.load %arg4[%c5, %c0_36] : memref<8x128xf32, #tpu.memory_space<vmem>>, vector<1x128xf32>
      %61 = arith.mulf %47, %59 : vector<1x128xf32>
      %62 = arith.subf %60, %61 : vector<1x128xf32>
      %c6 = arith.constant 6 : index
      %c0_37 = arith.constant 0 : index
      %63 = vector.load %arg4[%c6, %c0_37] : memref<8x128xf32, #tpu.memory_space<vmem>>, vector<1x128xf32>
      %c0_38 = arith.constant 0 : index
      %64 = memref.load %arg5[%c0_38] : memref<1xf32, #tpu.memory_space<smem>>
      %c0_i32_39 = arith.constant 0 : i32
      %c4_i32_40 = arith.constant 4 : i32
      %65 = arith.addi %c0_i32_39, %c4_i32_40 : i32
      %c1_i32_41 = arith.constant 1 : i32
      scf.for %arg9 = %c0_i32_39 to %65 step %c1_i32_41  : i32 {
        %c1_i32_43 = arith.constant 1 : i32
        %66 = arith.muli %arg9, %c1_i32_43 : i32
        %c0_i32_44 = arith.constant 0 : i32
        %67 = arith.addi %c0_i32_44, %66 : i32
        %c32_i32_45 = arith.constant 32 : i32
        %68 = arith.muli %67, %c32_i32_45 : i32
        %69 = tpu.assume_multiple %68, 32 : i32
        %70 = arith.index_cast %69 : i32 to index
        %c0_46 = arith.constant 0 : index
        %71 = vector.load %arg7[%70, %c0_46] : memref<128x128xbf16, #tpu.memory_space<vmem>>, vector<32x128xbf16>
        %72 = arith.extf %71 : vector<32x128xbf16> to vector<32x128xf32>
        %73 = vector.broadcast %59 : vector<1x128xf32> to vector<32x128xf32>
        %74 = arith.mulf %72, %73 : vector<32x128xf32>
        %75 = vector.broadcast %62 : vector<1x128xf32> to vector<32x128xf32>
        %76 = arith.addf %74, %75 : vector<32x128xf32>
        %cst_47 = arith.constant 0.000000e+00 : f32
        %77 = vector.broadcast %cst_47 : f32 to vector<32x128xf32>
        %78 = arith.maximumf %76, %77 : vector<32x128xf32>
        %79 = vector.broadcast %63 : vector<1x128xf32> to vector<32x128xf32>
        %80 = arith.mulf %78, %79 : vector<32x128xf32>
        %cst_48 = arith.constant dense<0.000000e+00> : vector<32xf32>
        %81 = vector.multi_reduction <add>, %80, %cst_48 [1] : vector<32x128xf32> to vector<32xf32>
        %82 = vector.broadcast %64 : f32 to vector<32xf32>
        %83 = arith.addf %81, %82 : vector<32xf32>
        %84 = vector.shape_cast %83 : vector<32xf32> to vector<1x32xf32>
        %85 = arith.index_cast %67 : i32 to index
        %c0_49 = arith.constant 0 : index
        %86 = vector.load %arg6[%85, %c0_49] : memref<4x32xf32, #tpu.memory_space<vmem>>, vector<1x32xf32>
        tpu.vector_store %arg6[%85, %c0_49], %84 {strides = array<i32>} : memref<4x32xf32, #tpu.memory_space<vmem>>, vector<1x32xf32>,
      }
      %c4_i32_42 = arith.constant 4 : i32
    } else {
    }
    return
  }
  func.func @transform_0(%arg0: i32) -> (i32, i32) {
    %c0_i32 = arith.constant 0 : i32
    %c0_i32_0 = arith.constant 0 : i32
    return %arg0, %c0_i32 : i32, i32
  }
  func.func @transform_1(%arg0: i32) -> (i32, i32) {
    %c0_i32 = arith.constant 0 : i32
    %c0_i32_0 = arith.constant 0 : i32
    %c0_i32_1 = arith.constant 0 : i32
    return %c0_i32, %c0_i32_0 : i32, i32
  }
  func.func @transform_2(%arg0: i32) -> (i32, i32) {
    %c0_i32 = arith.constant 0 : i32
    %c0_i32_0 = arith.constant 0 : i32
    %c0_i32_1 = arith.constant 0 : i32
    return %c0_i32, %c0_i32_0 : i32, i32
  }
  func.func @transform_3(%arg0: i32) -> (i32, i32) {
    %c0_i32 = arith.constant 0 : i32
    %c0_i32_0 = arith.constant 0 : i32
    %c0_i32_1 = arith.constant 0 : i32
    return %c0_i32, %c0_i32_0 : i32, i32
  }
  func.func @transform_4(%arg0: i32) -> i32 {
    %c0_i32 = arith.constant 0 : i32
    %c0_i32_0 = arith.constant 0 : i32
    return %c0_i32 : i32
  }
  func.func @transform_5(%arg0: i32) -> (i32, i32) {
    %c0_i32 = arith.constant 0 : i32
    %c0_i32_0 = arith.constant 0 : i32
    %c0_i32_1 = arith.constant 0 : i32
    return %c0_i32, %c0_i32_0 : i32, i32
  }
}

</mosaic_0001>

<llo_original>
// kernel: tpu_custom_call.1
$region0: #{tpu_custom_call.1}
  #allocation0 [shape = 'u32[]', space=smem, size = 0x4, offset = 0x4, fixed_abs, tag = 'smem constant byte address 0x4 - core index']
  #allocation1 [shape = 'u32[72,128]{1,0:T(1,128)}', space=vmem, size = 0x9000, scoped, tag = 'internal scratch']
  #allocation2 [shape = 'bf16[128,128]{1,0:T(8,128)(2,1)}', space=vmem, size = 0x8000, scoped, tag = 'scratch operand']
  #allocation3 [shape = 'f32[2,128]{1,0:T(2,128)}', space=vmem, size = 0x400, scoped, tag = 'scratch operand']
  #allocation4 [shape = 'f32[1]{0:T(128)S(6)}', space=smem, size = 0x200, scoped, tag = 'scoped memory for tpu_custom_call.1']
  %s0 = inlined_call_operand.vmem [shape: f32[100,16], index: 0, kind: input, shape index: {}]
  %s1 = inlined_call_operand.vmem [shape: bf16[16,128], index: 1, kind: input, shape index: {}]
  %s2 = inlined_call_operand.vmem [shape: bf16[128,128], index: 2, kind: input, shape index: {}]
  %s3 = inlined_call_operand.vmem [shape: f32[8,128], index: 3, kind: input, shape index: {}]
  %s4 = inlined_call_operand.<no memory space> [shape: f32[1], index: 4, kind: input, shape index: {}]
  %s5 = inlined_call_operand.hbm [shape: f32[4,32], index: 5, kind: output, shape index: {}]
  %s6 = sld [smem:[#allocation0]]
  $region83: #{tpu_custom_call.1} parent=0
    _
  %s8 = ssub.s32 1, %s6
  %s9 = scalar_select 0, %s8, %s6
  %10 = sst [smem:[#allocation4]] %s4
  $region1: #{tpu_custom_call.1} parent=0
    #allocation5 [shape = 'u8[2048]{0}', space=vmem, size = 0x800, scoped, tag = 'output window, operand 0, single buffered']
    #allocation6 [shape = 's32[2]{0}', space=sflag, size = 0x8, scoped, tag = 'scoped memory for tpu_custom_call.1']
    %11 = vsyncpa [#allocation6], 0
    loop: start=0, step=1, limit=6
    $region2: #{tpu_custom_call.1} parent=1 // loop_pre_header
      _
    $region3: #{tpu_custom_call.1} parent=1 // loop_header
      %s13 = sphi 0, %s17
      %p14 = scmp.ge.s32.totalorder %s13, 6
      %s23 = sphi 0, %s25
      %s26 = sphi 0, %s23
      %s27 = sphi 0, %s26
      %s43 = sphi 0, %s27
      %s47 = sphi 0, %s47
      %s49 = sphi 0, %s47
      %s50 = sphi 0, %s49
      %s64 = sphi 0, %s50
      %s68 = sphi 0, %s68
      %s70 = sphi 0, %s68
      %s71 = sphi 0, %s70
      %s85 = sphi 0, %s71
      %s89 = sphi 0, %s89
      %s91 = sphi 0, %s89
      %s92 = sphi 0, %s91
      %s106 = sphi 0, %s92
      %s110 = sphi 0, %s110
      %s112 = sphi 0, %s110
      %s113 = sphi 0, %s112
      %s127 = sphi 0, %s113
      %s131 = sphi 0, %s131
      %s133 = sphi 0, %s131
      %s134 = sphi 0, %s133
      %s148 = sphi 0, %s134
    $region4: #{tpu_custom_call.1} parent=1 // loop_header_branch
      %16 = sbr.rel (%p14) target = $region8
    $region5: #{tpu_custom_call.1} parent=1 // loop_body
      %s18 = ssub.s32 %s13, 1
      %s19 = ssub.s32 %s13, 2
      %s20 = sadd.s32 %s13, 1
      %s21 = ssub.s32 %s13, %s20
      %p22 = scmp.eq.s32.totalorder %s21, 0
      %s24 = sadd.s32 %s23, 1
      %s25 = scalar_select %p22, %s23, %s24
      %p28 = pneg %p22
      %p29 = scmp.eq.s32.totalorder %s13, 3
      %p30 = por %p28, %p29
      %p31 = scmp.ne.s32.totalorder %s23, %s26
      %p32 = scmp.eq.s32.totalorder %s13, 0
      %p33 = por %p31, %p32
      %p34 = scmp.ne.s32.totalorder %s23, %s26
      %p35 = scmp.eq.s32.totalorder %s18, 3
      %p36 = por %p34, %p35
      %p37 = scmp.ne.s32.totalorder %s26, %s27
      %p38 = scmp.eq.s32.totalorder %s18, 0
      %p39 = por %p37, %p38
      %p40 = scmp.ne.s32.totalorder %s26, %s27
      %p41 = scmp.eq.s32.totalorder %s19, 3
      %p42 = por %p40, %p41
      %p44 = scmp.ne.s32.totalorder %s27, %s43
      %p45 = scmp.eq.s32.totalorder %s19, 0
      %p46 = por %p44, %p45
      %s48 = sadd.s32 %s47, 1
      %p51 = scmp.eq.s32.totalorder %s13, 3
      %p52 = scmp.ne.s32.totalorder %s47, %s49
      %p53 = scmp.eq.s32.totalorder %s13, 0
      %p54 = por %p52, %p53
      %p55 = scmp.ne.s32.totalorder %s47, %s49
      %p56 = scmp.eq.s32.totalorder %s18, 3
      %p57 = por %p55, %p56
      %p58 = scmp.ne.s32.totalorder %s49, %s50
      %p59 = scmp.eq.s32.totalorder %s18, 0
      %p60 = por %p58, %p59
      %p61 = scmp.ne.s32.totalorder %s49, %s50
      %p62 = scmp.eq.s32.totalorder %s19, 3
      %p63 = por %p61, %p62
      %p65 = scmp.ne.s32.totalorder %s50, %s64
      %p66 = scmp.eq.s32.totalorder %s19, 0
      %p67 = por %p65, %p66
      %s69 = sadd.s32 %s68, 1
      %p72 = scmp.eq.s32.totalorder %s13, 3
      %p73 = scmp.ne.s32.totalorder %s68, %s70
      %p74 = scmp.eq.s32.totalorder %s13, 0
      %p75 = por %p73, %p74
      %p76 = scmp.ne.s32.totalorder %s68, %s70
      %p77 = scmp.eq.s32.totalorder %s18, 3
      %p78 = por %p76, %p77
      %p79 = scmp.ne.s32.totalorder %s70, %s71
      %p80 = scmp.eq.s32.totalorder %s18, 0
      %p81 = por %p79, %p80
      %p82 = scmp.ne.s32.totalorder %s70, %s71
      %p83 = scmp.eq.s32.totalorder %s19, 3
      %p84 = por %p82, %p83
      %p86 = scmp.ne.s32.totalorder %s71, %s85
      %p87 = scmp.eq.s32.totalorder %s19, 0
      %p88 = por %p86, %p87
      %s90 = sadd.s32 %s89, 1
      %p93 = scmp.eq.s32.totalorder %s13, 3
      %p94 = scmp.ne.s32.totalorder %s89, %s91
      %p95 = scmp.eq.s32.totalorder %s13, 0
      %p96 = por %p94, %p95
      %p97 = scmp.ne.s32.totalorder %s89, %s91
      %p98 = scmp.eq.s32.totalorder %s18, 3
      %p99 = por %p97, %p98
      %p100 = scmp.ne.s32.totalorder %s91, %s92
      %p101 = scmp.eq.s32.totalorder %s18, 0
      %p102 = por %p100, %p101
      %p103 = scmp.ne.s32.totalorder %s91, %s92
      %p104 = scmp.eq.s32.totalorder %s19, 3
      %p105 = por %p103, %p104
      %p107 = scmp.ne.s32.totalorder %s92, %s106
      %p108 = scmp.eq.s32.totalorder %s19, 0
      %p109 = por %p107, %p108
      %s111 = sadd.s32 %s110, 1
      %p114 = scmp.eq.s32.totalorder %s13, 3
      %p115 = scmp.ne.s32.totalorder %s110, %s112
      %p116 = scmp.eq.s32.totalorder %s13, 0
      %p117 = por %p115, %p116
      %p118 = scmp.ne.s32.totalorder %s110, %s112
      %p119 = scmp.eq.s32.totalorder %s18, 3
      %p120 = por %p118, %p119
      %p121 = scmp.ne.s32.totalorder %s112, %s113
      %p122 = scmp.eq.s32.totalorder %s18, 0
      %p123 = por %p121, %p122
      %p124 = scmp.ne.s32.totalorder %s112, %s113
      %p125 = scmp.eq.s32.totalorder %s19, 3
      %p126 = por %p124, %p125
      %p128 = scmp.ne.s32.totalorder %s113, %s127
      %p129 = scmp.eq.s32.totalorder %s19, 0
      %p130 = por %p128, %p129
      %s132 = sadd.s32 %s131, 1
      %p135 = scmp.eq.s32.totalorder %s13, 3
      %p136 = scmp.ne.s32.totalorder %s131, %s133
      %p137 = scmp.eq.s32.totalorder %s13, 0
      %p138 = por %p136, %p137
      %p139 = scmp.ne.s32.totalorder %s131, %s133
      %p140 = scmp.eq.s32.totalorder %s18, 3
      %p141 = por %p139, %p140
      %p142 = scmp.ne.s32.totalorder %s133, %s134
      %p143 = scmp.eq.s32.totalorder %s18, 0
      %p144 = por %p142, %p143
      %p145 = scmp.ne.s32.totalorder %s133, %s134
      %p146 = scmp.eq.s32.totalorder %s19, 3
      %p147 = por %p145, %p146
      %p149 = scmp.ne.s32.totalorder %s134, %s148
      %p150 = scmp.eq.s32.totalorder %s19, 0
      %p151 = por %p149, %p150
      %p152 = scmp.le.s32.totalorder 1, %s13
      %p153 = scmp.lt.s32.totalorder %s13, 5
      %p154 = pnand %p152, %p153
      %p155 = pneg %p154
      // Predicated region
      $region9: #{tpu_custom_call.1} parent=5 // pred_check
        _
      $region10: #{tpu_custom_call.1} parent=5 // pred_check_branch
        %157 = sbr.rel (%p154) target = $region12
      $region11: #{tpu_custom_call.1} parent=5 // pred_region
        %s158 = ssub.s32 %s13, 1
        // Predicated region
        $region13: #{tpu_custom_call.1} parent=11 // pred_check
          %p159 = pneg %p60
        $region14: #{tpu_custom_call.1} parent=11 // pred_check_branch
          %161 = sbr.rel (%p159) target = $region16
        $region15: #{tpu_custom_call.1} parent=11 // pred_region
          _
        $region16: #{tpu_custom_call.1} parent=11 // pred_fallthru
          _
        // Predicated region
        $region17: #{tpu_custom_call.1} parent=11 // pred_check
          %p162 = pneg %p81
        $region18: #{tpu_custom_call.1} parent=11 // pred_check_branch
          %164 = sbr.rel (%p162) target = $region20
        $region19: #{tpu_custom_call.1} parent=11 // pred_region
          _
        $region20: #{tpu_custom_call.1} parent=11 // pred_fallthru
          _
        // Predicated region
        $region21: #{tpu_custom_call.1} parent=11 // pred_check
          %p165 = pneg %p102
        $region22: #{tpu_custom_call.1} parent=11 // pred_check_branch
          %167 = sbr.rel (%p165) target = $region24
        $region23: #{tpu_custom_call.1} parent=11 // pred_region
          _
        $region24: #{tpu_custom_call.1} parent=11 // pred_fallthru
          _
        // Predicated region
        $region25: #{tpu_custom_call.1} parent=11 // pred_check
          %p168 = pneg %p123
        $region26: #{tpu_custom_call.1} parent=11 // pred_check_branch
          %170 = sbr.rel (%p168) target = $region28
        $region27: #{tpu_custom_call.1} parent=11 // pred_region
          _
        $region28: #{tpu_custom_call.1} parent=11 // pred_fallthru
          _
      $region12: #{tpu_custom_call.1} parent=5 // pred_fallthru
        _
      %p171 = scmp.lt.s32.totalorder %s13, 4
      // Predicated region
      $region29: #{tpu_custom_call.1} parent=5 // pred_check
        %p172 = pneg %p171
      $region30: #{tpu_custom_call.1} parent=5 // pred_check_branch
        %174 = sbr.rel (%p172) target = $region32
      $region31: #{tpu_custom_call.1} parent=5 // pred_region
        // Predicated region
        $region33: #{tpu_custom_call.1} parent=31 // pred_check
          %p175 = pneg %p33
        $region34: #{tpu_custom_call.1} parent=31 // pred_check_branch
          %177 = sbr.rel (%p175) target = $region36
        $region35: #{tpu_custom_call.1} parent=31 // pred_region
          %s178 = smul.u32 4, %s13
          %s179 = ssub.s32 13, %s178
          %p180 = scmp.lt.s32.totalorder %s179, 4
          %s181 = scalar_select %p180, %s179, 4
          %s182 = smul.u32 8, %s181
          %p183 = scmp.lt.s32.totalorder %s178, 12
          %s184 = scalar_select %p183, %s178, 12
          %s185 = smul.addr %s184, 8
          %s186 = scalar_lea.vmem %s0, %s185
          %s187 = smul.u32 4, %s13
          %s188 = ssub.s32 13, %s187
          %p189 = scmp.lt.s32.totalorder %s188, 4
          %s190 = scalar_select %p189, %s188, 4
          %s191 = smul.u32 8, %s190
        $region36: #{tpu_custom_call.1} parent=31 // pred_fallthru
          _
      $region32: #{tpu_custom_call.1} parent=5 // pred_fallthru
        _
      %p192 = scmp.le.s32.totalorder 1, %s13
      %p193 = scmp.lt.s32.totalorder %s13, 5
      %p194 = pnand %p192, %p193
      %p195 = pneg %p194
      // Predicated region
      $region37: #{tpu_custom_call.1} parent=5 // pred_check
        _
      $region38: #{tpu_custom_call.1} parent=5 // pred_check_branch
        %197 = sbr.rel (%p194) target = $region40
      $region39: #{tpu_custom_call.1} parent=5 // pred_region
        %s198 = ssub.s32 %s13, 1
        %s199 = smul.u32 4, %s18
        %s200 = ssub.s32 13, %s199
        %p201 = scmp.lt.s32.totalorder %s200, 4
        %s202 = scalar_select %p201, %s200, 4
        %s203 = smul.u32 8, %s202
        %p204 = scmp.lt.s32.totalorder %s199, 12
        %s205 = scalar_select %p204, %s199, 12
        %s206 = smul.addr %s205, 8
        %s207 = scalar_lea.vmem %s0, %s206
        %p208 = pneg %p39
        %p209 = pneg %p36
        %p210 = pneg %p60
        %p211 = pneg %p57
        %p212 = pneg %p81
        %p213 = pneg %p78
        %p214 = pneg %p102
        %p215 = pneg %p99
        %p216 = pneg %p123
        %p217 = pneg %p120
        %p218 = pneg %p144
        %p219 = pneg %p141
        %s220 = smul.u32 4, %s18
        %s221 = ssub.s32 13, %s220
        %p222 = scmp.lt.s32.totalorder %s221, 4
        %s223 = scalar_select %p222, %s221, 4
        %s224 = smul.u32 8, %s223
        %p225 = scmp.lt.s32.totalorder %s220, 12
        %s226 = scalar_select %p225, %s220, 12
        %s227 = smul.addr %s226, 8
        %s228 = scalar_lea.vmem %s0, %s227
        %s229 = smul.u32 4, %s18
        %s230 = ssub.s32 13, %s229
        %p231 = scmp.lt.s32.totalorder %s230, 4
        %s232 = scalar_select %p231, %s230, 4
        %s233 = smul.u32 8, %s232
        %p235 = scmp.eq.s32.totalorder %s18, 0
        // Predicated region
        $region41: #{tpu_custom_call.1} parent=39 // pred_check
          %p236 = pneg %p235
        $region42: #{tpu_custom_call.1} parent=39 // pred_check_branch
          %238 = sbr.rel (%p236) target = $region44
        $region43: #{tpu_custom_call.1} parent=39 // pred_region
          %239 = vst [vmem:[#allocation3] sm:$0x3] 0.0
        $region44: #{tpu_custom_call.1} parent=39 // pred_fallthru
          _
        %v240 = vld [vmem:[%s228] sm:$0xff]
        %v241 = vld [vmem:[%s228 + $0x8] sm:$0xff]
        %v242 = vld [vmem:[%s228 + $0x10] sm:$0xff]
        %v243 = vld [vmem:[%s228 + $0x18] sm:$0xff]
        %v244 = vpack.c.bf16 %v241, %v240
        %v245 = vpack.c.bf16 %v243, %v242
        %v246 = vld [vmem:[%s1] sm:$0xf]
        %v247 = vld [vmem:[%s1 + $0x4] sm:$0xf]
        %v250 = vunpack.c.l.b16 %v246
        %v251 = vunpack.c.l.b16 %v247
        %v252 = vpack.c.b16 %v251, %v250
        %vm254 = vcmask 130048
        %v256 = vsel %vm254, %v244, 0
        %v259 = vsel %vm254, %v245, 0
        %261 = vmatpush.bf16.msra.mxu0 0
        %262 = vmatpush.bf16.msra.mxu0 0
        %263 = vmatpush.bf16.msra.mxu0 0
        %264 = vmatpush.bf16.msra.mxu0 0
        %265 = vmatpush.bf16.msra.mxu0 0
        %266 = vmatpush.bf16.msra.mxu0 0
        %267 = vmatpush.bf16.msra.mxu0 0
        %268 = vmatpush.bf16.msra.mxu0 %v252
        %269 = vmatmul.bf16.gmra.mxu0 %v256
        %v270 = vpop.f32.mrf.mxu0
        %v271 = vadd.f32 0.0, %v270
        %v272 = vpop.f32.mrf.mxu0
        %v273 = vadd.f32 0.0, %v272
        %274 = vmatmul.bf16.gmra.mxu0 %v259
        %v275 = vpop.f32.mrf.mxu0
        %v276 = vadd.f32 0.0, %v275
        %v277 = vpop.f32.mrf.mxu0
        %v278 = vadd.f32 0.0, %v277
        %279 = vdwg.mxu0
        %s280 = sadd.s32 %s18, 1
        %s281 = smul.u32 %s280, 32
        %p282 = scmp.le.s32.totalorder %s281, 100
        // Predicated region
        $region45: #{tpu_custom_call.1} parent=39 // pred_check
          %p283 = pneg %p282
        $region46: #{tpu_custom_call.1} parent=39 // pred_check_branch
          %285 = sbr.rel (%p283) target = $region48
        $region47: #{tpu_custom_call.1} parent=39 // pred_region
          %v286 = vld [vmem:[#allocation3] sm:$0x1]
          %v287 = vadd.f32 %v271, %v273
          %v288 = vadd.f32 %v287, %v276
          %v289 = vadd.f32 %v288, %v278
          %v290 = vrot.slane %v289, 4
          %v291 = vadd.f32 %v289, %v290
          %v292 = vrot.slane %v291, 2
          %v293 = vadd.f32 %v291, %v292
          %v294 = vrot.slane %v293, 1
          %v295 = vadd.f32 %v293, %v294
          %v296 = vadd.f32 %v286, %v295
          %297 = vst [vmem:[#allocation3] sm:$0x1] %v296
          %v298 = vld [vmem:[#allocation3 + $0x1] sm:$0x1]
          %v299 = vmul.f32 %v271, %v271
          %v300 = vmul.f32 %v273, %v273
          %v301 = vmul.f32 %v276, %v276
          %v302 = vmul.f32 %v278, %v278
          %v303 = vadd.f32 %v299, %v300
          %v304 = vadd.f32 %v303, %v301
          %v305 = vadd.f32 %v304, %v302
          %v306 = vrot.slane %v305, 4
          %v307 = vadd.f32 %v305, %v306
          %v308 = vrot.slane %v307, 2
          %v309 = vadd.f32 %v307, %v308
          %v310 = vrot.slane %v309, 1
          %v311 = vadd.f32 %v309, %v310
          %v312 = vadd.f32 %v298, %v311
          %313 = vst [vmem:[#allocation3 + $0x1] sm:$0x1] %v312
        $region48: #{tpu_custom_call.1} parent=39 // pred_fallthru
          _
        %p314 = scmp.gt.s32.totalorder %s281, 100
        // Predicated region
        $region49: #{tpu_custom_call.1} parent=39 // pred_check
          %p315 = pneg %p314
        $region50: #{tpu_custom_call.1} parent=39 // pred_check_branch
          %317 = sbr.rel (%p315) target = $region52
        $region51: #{tpu_custom_call.1} parent=39 // pred_region
          %v318 = vlaneseq
          %v319 = vshrl.u32 %v318, 7
          %v320 = vadd.s32 %v319, 8
          %v321 = vadd.s32 %v319, 16
          %v322 = vadd.s32 %v319, 24
          %s323 = smul.u32 %s18, 32
          %v324 = vstv %s323
          %v325 = vadd.s32 %v319, %v324
          %v326 = vadd.s32 %v320, %v324
          %v327 = vadd.s32 %v321, %v324
          %v328 = vadd.s32 %v322, %v324
          %vm329 = vcmp.lt.s32.totalorder %v325, 100
          %vm330 = vcmp.lt.s32.totalorder %v326, 100
          %vm331 = vcmp.lt.s32.totalorder %v327, 100
          %vm332 = vcmp.lt.s32.totalorder %v328, 100
          %v333 = vsel %vm329, 1, 0
          %v334 = vsel %vm330, 1, 0
          %v335 = vsel %vm331, 1, 0
          %v336 = vsel %vm332, 1, 0
          %vm337 = vcmp.eq.s32.totalorder %v333, 1
          %vm338 = vcmp.eq.s32.totalorder %v334, 1
          %vm339 = vcmp.eq.s32.totalorder %v335, 1
          %vm340 = vcmp.eq.s32.totalorder %v336, 1
          %v341 = vsel %vm337, %v271, 0.0
          %v342 = vsel %vm338, %v273, 0.0
          %v343 = vsel %vm339, %v276, 0.0
          %v344 = vsel %vm340, %v278, 0.0
          %v345 = vld [vmem:[#allocation3] sm:$0x1]
          %v346 = vadd.f32 %v341, %v342
          %v347 = vadd.f32 %v346, %v343
          %v348 = vadd.f32 %v347, %v344
          %v349 = vrot.slane %v348, 4
          %v350 = vadd.f32 %v348, %v349
          %v351 = vrot.slane %v350, 2
          %v352 = vadd.f32 %v350, %v351
          %v353 = vrot.slane %v352, 1
          %v354 = vadd.f32 %v352, %v353
          %v355 = vadd.f32 %v345, %v354
          %356 = vst [vmem:[#allocation3] sm:$0x1] %v355
          %v357 = vld [vmem:[#allocation3 + $0x1] sm:$0x1]
          %v358 = vmul.f32 %v341, %v341
          %v359 = vmul.f32 %v342, %v342
          %v360 = vmul.f32 %v343, %v343
          %v361 = vmul.f32 %v344, %v344
          %v362 = vadd.f32 %v358, %v359
          %v363 = vadd.f32 %v362, %v360
          %v364 = vadd.f32 %v363, %v361
          %v365 = vrot.slane %v364, 4
          %v366 = vadd.f32 %v364, %v365
          %v367 = vrot.slane %v366, 2
          %v368 = vadd.f32 %v366, %v367
          %v369 = vrot.slane %v368, 1
          %v370 = vadd.f32 %v368, %v369
          %v371 = vadd.f32 %v357, %v370
          %372 = vst [vmem:[#allocation3 + $0x1] sm:$0x1] %v371
        $region52: #{tpu_custom_call.1} parent=39 // pred_fallthru
          _
        %s373 = smul.u32 %s18, 32
        %v374 = vpack.c.bf16 %v271, %v271
        %v375 = vpack.c.bf16 %v273, %v273
        %v376 = vpack.c.bf16 %v276, %v276
        %v377 = vpack.c.bf16 %v278, %v278
        %s378 = sshra.s32 %s373, 3
        %s379 = sand.u32 %s373, 7
        %s380 = smul.addr %s378, 4
        %s381 = scalar_lea.vmem [#allocation2], %s380
        %382 = vst [vmem:[%s381] sm:$0xf] %v374
        %383 = vst [vmem:[%s381 + $0x4] sm:$0xf] %v375
        %384 = vst [vmem:[%s381 + $0x8] sm:$0xf] %v376
        %385 = vst [vmem:[%s381 + $0xc] sm:$0xf] %v377
        %p386 = scmp.eq.s32.totalorder %s18, 3
        // Predicated region
        $region53: #{tpu_custom_call.1} parent=39 // pred_check
          %p387 = pneg %p386
        $region54: #{tpu_custom_call.1} parent=39 // pred_check_branch
          %389 = sbr.rel (%p387) target = $region56
        $region55: #{tpu_custom_call.1} parent=39 // pred_region
          %v390 = vld [vmem:[#allocation3] sm:$0x1]
          %v391 = vmul.f32 %v390, 0.01
          %v392 = vld [vmem:[#allocation3 + $0x1] sm:$0x1]
          %v393 = vmul.f32 %v392, 0.01
          %v394 = vmul.f32 %v391, %v391
          %v395 = vsub.f32 %v393, %v394
          %v396 = vmax.f32 %v395, 0.0
          %v397 = vadd.f32 %v396, 1e-05
          %v398 = vrsqrt.pop %v397
          %v399 = vmul.f32 %v398, %v397
          %v400 = vmul.f32 %v399, %v398
          %v401 = vmul.f32 0.5, %v400
          %v402 = vsub.f32 1.5, %v401
          %v403 = vmul.f32 %v398, %v402
          %vm404 = vweird.f32 %v397
          %vm405 = vweird.f32 %v398
          %vm406 = vmor %vm404, %vm405
          %v407 = vsel %vm406, %v398, %v403
          %v408 = vld [vmem:[%s3 + $0x1] sm:$0x1]
          %v409 = vmul.f32 %v407, %v408
          %v410 = vld [vmem:[%s3 + $0x2] sm:$0x1]
          %v411 = vmul.f32 %v391, %v409
          %v412 = vsub.f32 %v410, %v411
          %v413 = vld [vmem:[%s2] sm:$0xf]
          %v414 = vld [vmem:[%s2 + $0x4] sm:$0xf]
          %v415 = vld [vmem:[%s2 + $0x8] sm:$0xf]
          %v416 = vld [vmem:[%s2 + $0xc] sm:$0xf]
          %v417 = vld [vmem:[%s2 + $0x10] sm:$0xf]
          %v418 = vld [vmem:[%s2 + $0x14] sm:$0xf]
          %v419 = vld [vmem:[%s2 + $0x18] sm:$0xf]
          %v420 = vld [vmem:[%s2 + $0x1c] sm:$0xf]
          %v421 = vld [vmem:[%s2 + $0x20] sm:$0xf]
          %v422 = vld [vmem:[%s2 + $0x24] sm:$0xf]
          %v423 = vld [vmem:[%s2 + $0x28] sm:$0xf]
          %v424 = vld [vmem:[%s2 + $0x2c] sm:$0xf]
          %v425 = vld [vmem:[%s2 + $0x30] sm:$0xf]
          %v426 = vld [vmem:[%s2 + $0x34] sm:$0xf]
          %v427 = vld [vmem:[%s2 + $0x38] sm:$0xf]
          %v428 = vld [vmem:[%s2 + $0x3c] sm:$0xf]
          %429 = vst [vmem:[#allocation3] sm:$0x3] 0.0
          loop: start=0, step=1, limit=4
          $region57: #{tpu_custom_call.1} parent=55 // loop_pre_header
            _
          $region58: #{tpu_custom_call.1} parent=55 // loop_header
            %s431 = sphi 0, %s435
            %p432 = scmp.ge.s32.totalorder %s431, 4
          $region59: #{tpu_custom_call.1} parent=55 // loop_header_branch
            %434 = sbr.rel (%p432) target = $region63
          $region60: #{tpu_custom_call.1} parent=55 // loop_body
            %s436 = smul.u32 %s431, 32
            %s437 = sshra.s32 %s436, 3
            %s438 = sand.u32 %s436, 7
            %s439 = smul.addr %s437, 4
            %s440 = scalar_lea.vmem [#allocation2], %s439
            %v441 = vld [vmem:[%s440] sm:$0xf]
            %v442 = vld [vmem:[%s440 + $0x4] sm:$0xf]
            %v443 = vld [vmem:[%s440 + $0x8] sm:$0xf]
            %v444 = vld [vmem:[%s440 + $0xc] sm:$0xf]
            %v445 = vunpack.c.l.bf16 %v441
            %v446 = vunpack.c.l.bf16 %v442
            %v447 = vunpack.c.l.bf16 %v443
            %v448 = vunpack.c.l.bf16 %v444
            %v449 = vperm.slane %v409, 0
            %v450 = vmul.f32 %v445, %v449
            %v451 = vmul.f32 %v446, %v449
            %v452 = vmul.f32 %v447, %v449
            %v453 = vmul.f32 %v448, %v449
            %v454 = vperm.slane %v412, 0
            %v455 = vadd.f32 %v450, %v454
            %v456 = vadd.f32 %v451, %v454
            %v457 = vadd.f32 %v452, %v454
            %v458 = vadd.f32 %v453, %v454
            %v459 = vmax.f32 %v455, 0.0
            %v460 = vmax.f32 %v456, 0.0
            %v461 = vmax.f32 %v457, 0.0
            %v462 = vmax.f32 %v458, 0.0
            %v463 = vpack.c.bf16 %v460, %v459
            %v464 = vpack.c.bf16 %v462, %v461
            %v481 = vunpack.c.l.b16 %v413
            %v482 = vunpack.c.l.b16 %v414
            %v483 = vunpack.c.l.b16 %v415
            %v484 = vunpack.c.l.b16 %v416
            %v485 = vunpack.c.l.b16 %v417
            %v486 = vunpack.c.l.b16 %v418
            %v487 = vunpack.c.l.b16 %v419
            %v488 = vunpack.c.l.b16 %v420
            %v489 = vunpack.c.l.b16 %v421
            %v490 = vunpack.c.l.b16 %v422
            %v491 = vunpack.c.l.b16 %v423
            %v492 = vunpack.c.l.b16 %v424
            %v493 = vunpack.c.l.b16 %v425
            %v494 = vunpack.c.l.b16 %v426
            %v495 = vunpack.c.l.b16 %v427
            %v496 = vunpack.c.l.b16 %v428
            %v497 = vpack.c.b16 %v482, %v481
            %v498 = vpack.c.b16 %v484, %v483
            %v499 = vpack.c.b16 %v486, %v485
            %v500 = vpack.c.b16 %v488, %v487
            %v501 = vpack.c.b16 %v490, %v489
            %v502 = vpack.c.b16 %v492, %v491
            %v503 = vpack.c.b16 %v494, %v493
            %v504 = vpack.c.b16 %v496, %v495
            %513 = vmatpush.bf16.msra.mxu0 %v504
            %514 = vmatpush.bf16.msra.mxu0 %v503
            %515 = vmatpush.bf16.msra.mxu0 %v502
            %516 = vmatpush.bf16.msra.mxu0 %v501
            %517 = vmatpush.bf16.msra.mxu0 %v500
            %518 = vmatpush.bf16.msra.mxu0 %v499
            %519 = vmatpush.bf16.msra.mxu0 %v498
            %520 = vmatpush.bf16.msra.mxu0 %v497
            %521 = vmatmul.bf16.gmra.mxu0 %v463
            %v522 = vpop.f32.mrf.mxu0
            %v523 = vadd.f32 0.0, %v522
            %v524 = vpop.f32.mrf.mxu0
            %v525 = vadd.f32 0.0, %v524
            %526 = vmatmul.bf16.gmra.mxu0 %v464
            %v527 = vpop.f32.mrf.mxu0
            %v528 = vadd.f32 0.0, %v527
            %v529 = vpop.f32.mrf.mxu0
            %v530 = vadd.f32 0.0, %v529
            %531 = vdwg.mxu0
            %v532 = vlaneseq
            %v533 = vshrl.u32 %v532, 7
            %v534 = vadd.s32 %v533, 8
            %v535 = vadd.s32 %v533, 16
            %v536 = vadd.s32 %v533, 24
            %v537 = vstv %s436
            %v538 = vadd.s32 %v533, %v537
            %v539 = vadd.s32 %v534, %v537
            %v540 = vadd.s32 %v535, %v537
            %v541 = vadd.s32 %v536, %v537
            %vm542 = vcmp.lt.s32.totalorder %v538, 100
            %vm543 = vcmp.lt.s32.totalorder %v539, 100
            %vm544 = vcmp.lt.s32.totalorder %v540, 100
            %vm545 = vcmp.lt.s32.totalorder %v541, 100
            %v546 = vsel %vm542, 1, 0
            %v547 = vsel %vm543, 1, 0
            %v548 = vsel %vm544, 1, 0
            %v549 = vsel %vm545, 1, 0
            %vm550 = vcmp.eq.s32.totalorder %v546, 1
            %vm551 = vcmp.eq.s32.totalorder %v547, 1
            %vm552 = vcmp.eq.s32.totalorder %v548, 1
            %vm553 = vcmp.eq.s32.totalorder %v549, 1
            %v554 = vsel %vm550, %v523, 0.0
            %v555 = vsel %vm551, %v525, 0.0
            %v556 = vsel %vm552, %v528, 0.0
            %v557 = vsel %vm553, %v530, 0.0
            %v558 = vld [vmem:[#allocation3] sm:$0x1]
            %v559 = vadd.f32 %v554, %v555
            %v560 = vadd.f32 %v559, %v556
            %v561 = vadd.f32 %v560, %v557
            %v562 = vrot.slane %v561, 4
            %v563 = vadd.f32 %v561, %v562
            %v564 = vrot.slane %v563, 2
            %v565 = vadd.f32 %v563, %v564
            %v566 = vrot.slane %v565, 1
            %v567 = vadd.f32 %v565, %v566
            %v568 = vadd.f32 %v558, %v567
            %569 = vst [vmem:[#allocation3] sm:$0x1] %v568
            %v570 = vld [vmem:[#allocation3 + $0x1] sm:$0x1]
            %v571 = vmul.f32 %v554, %v554
            %v572 = vmul.f32 %v555, %v555
            %v573 = vmul.f32 %v556, %v556
            %v574 = vmul.f32 %v557, %v557
            %v575 = vadd.f32 %v571, %v572
            %v576 = vadd.f32 %v575, %v573
            %v577 = vadd.f32 %v576, %v574
            %v578 = vrot.slane %v577, 4
            %v579 = vadd.f32 %v577, %v578
            %v580 = vrot.slane %v579, 2
            %v581 = vadd.f32 %v579, %v580
            %v582 = vrot.slane %v581, 1
            %v583 = vadd.f32 %v581, %v582
            %v584 = vadd.f32 %v570, %v583
            %585 = vst [vmem:[#allocation3 + $0x1] sm:$0x1] %v584
            %v586 = vpack.c.bf16 %v523, %v523
            %v587 = vpack.c.bf16 %v525, %v525
            %v588 = vpack.c.bf16 %v528, %v528
            %v589 = vpack.c.bf16 %v530, %v530
            %590 = vst [vmem:[%s440] sm:$0xf] %v586
            %591 = vst [vmem:[%s440 + $0x4] sm:$0xf] %v587
            %592 = vst [vmem:[%s440 + $0x8] sm:$0xf] %v588
            %593 = vst [vmem:[%s440 + $0xc] sm:$0xf] %v589
          $region61: #{tpu_custom_call.1} parent=55 // loop_footer
            %s435 = sadd.s32 1, %s431
          $region62: #{tpu_custom_call.1} parent=55 // loop_footer_branch
            %430 = sbr.rel target = $region58
          $region63: #{tpu_custom_call.1} parent=55 // loop_exit
            _
          %v594 = vld [vmem:[#allocation3] sm:$0x1]
          %v595 = vmul.f32 %v594, 0.01
          %v596 = vld [vmem:[#allocation3 + $0x1] sm:$0x1]
          %v597 = vmul.f32 %v596, 0.01
          %v598 = vmul.f32 %v595, %v595
          %v599 = vsub.f32 %v597, %v598
          %v600 = vmax.f32 %v599, 0.0
          %v601 = vadd.f32 %v600, 1e-05
          %v602 = vrsqrt.pop %v601
          %v603 = vmul.f32 %v602, %v601
          %v604 = vmul.f32 %v603, %v602
          %v605 = vmul.f32 0.5, %v604
          %v606 = vsub.f32 1.5, %v605
          %v607 = vmul.f32 %v602, %v606
          %vm608 = vweird.f32 %v601
          %vm609 = vweird.f32 %v602
          %vm610 = vmor %vm608, %vm609
          %v611 = vsel %vm610, %v602, %v607
          %v612 = vld [vmem:[%s3 + $0x4] sm:$0x1]
          %v613 = vmul.f32 %v611, %v612
          %v614 = vld [vmem:[%s3 + $0x5] sm:$0x1]
          %v615 = vmul.f32 %v595, %v613
          %v616 = vsub.f32 %v614, %v615
          %v617 = vld [vmem:[%s3 + $0x6] sm:$0x1]
          %s618 = sld [smem:[#allocation4]]
          loop: start=0, step=1, limit=4
          $region64: #{tpu_custom_call.1} parent=55 // loop_pre_header
            _
          $region65: #{tpu_custom_call.1} parent=55 // loop_header
            %s620 = sphi 0, %s624
            %p621 = scmp.ge.s32.totalorder %s620, 4
          $region66: #{tpu_custom_call.1} parent=55 // loop_header_branch
            %623 = sbr.rel (%p621) target = $region70
          $region67: #{tpu_custom_call.1} parent=55 // loop_body
            %s625 = smul.u32 %s620, 32
            %s626 = sshra.s32 %s625, 3
            %s627 = sand.u32 %s625, 7
            %s628 = smul.addr %s626, 4
            %s629 = scalar_lea.vmem [#allocation2], %s628
            %v630 = vld [vmem:[%s629] sm:$0xf]
            %v631 = vld [vmem:[%s629 + $0x4] sm:$0xf]
            %v632 = vld [vmem:[%s629 + $0x8] sm:$0xf]
            %v633 = vld [vmem:[%s629 + $0xc] sm:$0xf]
            %v634 = vunpack.c.l.bf16 %v630
            %v635 = vunpack.c.l.bf16 %v631
            %v636 = vunpack.c.l.bf16 %v632
            %v637 = vunpack.c.l.bf16 %v633
            %v638 = vperm.slane %v613, 0
            %v639 = vmul.f32 %v634, %v638
            %v640 = vmul.f32 %v635, %v638
            %v641 = vmul.f32 %v636, %v638
            %v642 = vmul.f32 %v637, %v638
            %v643 = vperm.slane %v616, 0
            %v644 = vadd.f32 %v639, %v643
            %v645 = vadd.f32 %v640, %v643
            %v646 = vadd.f32 %v641, %v643
            %v647 = vadd.f32 %v642, %v643
            %v648 = vmax.f32 %v644, 0.0
            %v649 = vmax.f32 %v645, 0.0
            %v650 = vmax.f32 %v646, 0.0
            %v651 = vmax.f32 %v647, 0.0
            %v652 = vperm.slane %v617, 0
            %v653 = vmul.f32 %v648, %v652
            %v654 = vmul.f32 %v649, %v652
            %v655 = vmul.f32 %v650, %v652
            %v656 = vmul.f32 %v651, %v652
            %657 = vadd.xlane.f32.xlu0 %v653
            %v658 = vpop.xlane.xlu0 %657
            %659 = vadd.xlane.f32.xlu0 %v654
            %v660 = vpop.xlane.xlu0 %659
            %661 = vadd.xlane.f32.xlu0 %v655
            %v662 = vpop.xlane.xlu0 %661
            %663 = vadd.xlane.f32.xlu0 %v656
            %v664 = vpop.xlane.xlu0 %663
            %v665 = vstv %s618
            %v666 = vadd.f32 %v658, %v665
            %v667 = vadd.f32 %v660, %v665
            %v668 = vadd.f32 %v662, %v665
            %v669 = vadd.f32 %v664, %v665
            %v674 = vlaneseq
            %v675 = vand.u32 %v674, 127
            %v676 = vperm.slane %v666, %v675
            %v677 = vadd.s32 %v675, 4294967288
            %v678 = vperm.slane %v667, %v677
            %vm679 = vcmask 130112
            %v680 = vsel %vm679, %v678, %v676
            %v681 = vadd.s32 %v675, 4294967280
            %v682 = vperm.slane %v668, %v681
            %vm683 = vcmask 195712
            %v684 = vsel %vm683, %v682, %v680
            %v685 = vadd.s32 %v675, 4294967272
            %v686 = vperm.slane %v669, %v685
            %vm687 = vcmask 261312
            %v688 = vsel %vm687, %v686, %v684
            %s690 = scalar_lea.vmem [#allocation5], %s620
            %vm691 = vcmask 253952
            %692 = vst.msk [vmem:[%s690] sm:$0x1] %vm691, %v688
          $region68: #{tpu_custom_call.1} parent=55 // loop_footer
            %s624 = sadd.s32 1, %s620
          $region69: #{tpu_custom_call.1} parent=55 // loop_footer_branch
            %619 = sbr.rel target = $region65
          $region70: #{tpu_custom_call.1} parent=55 // loop_exit
            _
        $region56: #{tpu_custom_call.1} parent=39 // pred_fallthru
          _
        // Predicated region
        $region71: #{tpu_custom_call.1} parent=39 // pred_check
          %p693 = pneg %p141
        $region72: #{tpu_custom_call.1} parent=39 // pred_check_branch
          %695 = sbr.rel (%p693) target = $region74
        $region73: #{tpu_custom_call.1} parent=39 // pred_region
          %697 = vsyncadd [#allocation6], 0
          %s699 = sshll.u32 [#allocation5], 4
          %s700 = int_to_ptr.vmem [resolvable:$true] %s699
          %s701 = sshll.u32 %s5, 4
          %s702 = int_to_ptr.hbm [resolvable:$true] %s701
          %704 = dma.vmem_to_hbm [thread:$0]  %s700, 64, %s702, [#allocation6]
        $region74: #{tpu_custom_call.1} parent=39 // pred_fallthru
          _
        // Predicated region
        $region75: #{tpu_custom_call.1} parent=39 // pred_check
          %p705 = pneg %p141
        $region76: #{tpu_custom_call.1} parent=39 // pred_check_branch
          %707 = sbr.rel (%p705) target = $region78
        $region77: #{tpu_custom_call.1} parent=39 // pred_region
          %709 = dma.done [#allocation6], 64
        $region78: #{tpu_custom_call.1} parent=39 // pred_fallthru
          _
      $region40: #{tpu_custom_call.1} parent=5 // pred_fallthru
        _
      %p710 = scmp.le.s32.totalorder 2, %s13
      // Predicated region
      $region79: #{tpu_custom_call.1} parent=5 // pred_check
        %p711 = pneg %p710
      $region80: #{tpu_custom_call.1} parent=5 // pred_check_branch
        %713 = sbr.rel (%p711) target = $region82
      $region81: #{tpu_custom_call.1} parent=5 // pred_region
        %s714 = ssub.s32 %s13, 2
      $region82: #{tpu_custom_call.1} parent=5 // pred_fallthru
        _
    $region6: #{tpu_custom_call.1} parent=1 // loop_footer
      %s17 = sadd.s32 1, %s13
    $region7: #{tpu_custom_call.1} parent=1 // loop_footer_branch
      %12 = sbr.rel target = $region3
    $region8: #{tpu_custom_call.1} parent=1 // loop_exit
      _
    %715 = vsyncpa [#allocation6], 1
    %s716 = scalar_lea.sflag [#allocation6], 1
    %717 = vsyncpa %s716, 1

</llo_original>
